<compile_context>
chip_gen: v5e
topology: v5e:2x2
jax: 0.10.0
libtpu: 0.0.40
codegen_flags: <defaults>
</compile_context>

<pallas_src>
import functools
import math

import jax
import jax.numpy as jnp
from jax.experimental import pallas as pl
from jax.experimental.pallas import tpu as pltpu


def _round_up(v, m):
    return -(-v // m) * m


# --------------------------------------------------------------------------- kernel


def _multiplication_kernel(x_ref, w_ref, o_ref):
    """One (Q-tile, D-tile) grid step.

    x_ref : (tile_q, tile_d)   query feature tile
    w_ref : (tile_d, C)        class prototypes (K on sublanes)
    o_ref : (tile_q, C) f32    resident across the reduction axis (index_map ignores k);
                               used directly as the accumulator.
    """
    k = pl.program_id(1)

    @pl.when(k == 0)
    def _init():
        o_ref[...] = jnp.zeros_like(o_ref)

    # Partial logits: plain (M,K) x (K,N) matmul, f32 accumulation.
    o_ref[...] += jnp.dot(x_ref[...], w_ref[...],
                          preferred_element_type=jnp.float32)

    @pl.when(k == pl.num_programs(1) - 1)
    def _finalize():
        logits = o_ref[...]
        m = jnp.max(logits, axis=1, keepdims=True)           # numerically stable softmax
        e = jnp.exp(logits - m)
        o_ref[...] = e / jnp.sum(e, axis=1, keepdims=True)   # exact divide, off hot path


# --------------------------------------------------------------------------- tiling


def _vmem_budgets():
    """(input_tile_budget_bytes, vmem_limit_bytes) keyed off the chip generation."""
    cap = None
    try:
        cap = getattr(pltpu.get_tpu_info(), "vmem_capacity_bytes", None)
    except Exception:  # no TPU info available -> assume the smallest (v7x: 64 MiB)
        cap = None
    if cap is None or cap <= 64 * 1024 * 1024:
        # v7x: 64 MiB VMEM per TensorCore -> stay well under it.
        return 24 * 1024 * 1024, 48 * 1024 * 1024
    # v5e / v6e: 128 MiB physical VMEM -> bigger tiles amortize per-step overhead.
    return 48 * 1024 * 1024, 80 * 1024 * 1024


def _pick_tile_q(q):
    """>= 2 blocks on the parallel Q axis when possible (v7x megacore), cap at 128."""
    if q <= 8:
        return 8
    if q <= 16:
        return 8
    return min(128, _round_up(_round_up(q, 2) // 2, 8))


def _pick_tile_d(d, tile_q, c, budget_bytes, elem_bytes):
    """Pick a lane-aligned D tile within the double-buffered VMEM budget; return
    (tile_d, d_pad) where d_pad = num_tiles * tile_d (minimal zero-padding)."""
    d_aligned = _round_up(d, 128)
    max_td = budget_bytes // (2 * elem_bytes * (tile_q + c))   # 2x: double buffering
    max_td = max(128, (max_td // 128) * 128)
    if d_aligned <= max_td:
        return d_aligned, d_aligned
    num_tiles = -(-d_aligned // max_td)
    tile_d = _round_up(-(-d_aligned // num_tiles), 128)
    return tile_d, num_tiles * tile_d


# --------------------------------------------------------------------------- wrapper


def multiplication_forward(x, y, *, tile_q=None, tile_d=None, stream_dtype=None):
    """x: (Q, C_in, H, W); y: list of (N_i, C_in, H, W) per class (ragged OK) or a
    stacked (class_num, N, C_in, H, W) array.  Returns (Q, class_num) float32."""
    q = x.shape[0]
    d = math.prod(x.shape[1:])
    x_flat = x.reshape(q, d).astype(jnp.float32)      # same as torch .view(Q, -1)

    # Hoisted support-set reduction (prototype means) — tiny vs the query stream,
    # done once in XLA; handles ragged per-class support counts.
    if isinstance(y, (list, tuple)):
        protos = jnp.stack(
            [jnp.mean(cls.reshape(cls.shape[0], -1).astype(jnp.float32), axis=0)
             for cls in y], axis=0)                    # (class_num, D)
    else:
        c_, n_ = y.shape[0], y.shape[1]
        protos = jnp.mean(y.reshape(c_, n_, d).astype(jnp.float32), axis=1)
    c = protos.shape[0]
    w = protos.T                                       # (D, C): K on the sublane axis

    if stream_dtype is not None:                       # optional bf16 streaming
        x_flat = x_flat.astype(stream_dtype)
        w = w.astype(stream_dtype)
    elem_bytes = jnp.dtype(x_flat.dtype).itemsize

    budget_bytes, vmem_limit = _vmem_budgets()

    if tile_q is None:
        tile_q = _pick_tile_q(q)
    else:
        tile_q = _round_up(tile_q, 8)
    q_pad = _round_up(q, tile_q)

    if tile_d is None:
        tile_d, d_pad = _pick_tile_d(d, tile_q, c, budget_bytes, elem_bytes)
    else:
        tile_d = _round_up(tile_d, 128)
        d_pad = _round_up(d, tile_d)

    # Zero-padding is exact for dot products; padded query rows are sliced off below.
    if q_pad != q or d_pad != d:
        x_flat = jnp.pad(x_flat, ((0, q_pad - q), (0, d_pad - d)))
    if d_pad != d:
        w = jnp.pad(w, ((0, d_pad - d), (0, 0)))

    grid = (q_pad // tile_q, d_pad // tile_d)

    out = pl.pallas_call(
        _multiplication_kernel,
        out_shape=jax.ShapeDtypeStruct((q_pad, c), jnp.float32),
        grid_spec=pltpu.PrefetchScalarGridSpec(
            num_scalar_prefetch=0,
            grid=grid,
            in_specs=[
                pl.BlockSpec((tile_q, tile_d), lambda i, k: (i, k)),
                pl.BlockSpec((tile_d, c), lambda i, k: (k, 0)),
            ],
            out_specs=pl.BlockSpec((tile_q, c), lambda i, k: (i, 0)),
        ),
        compiler_params=pltpu.CompilerParams(
            dimension_semantics=("parallel", "arbitrary"),
            vmem_limit_bytes=vmem_limit,
        ),
    )(x_flat, w)

    return out[:q]


# --------------------------------------------------------------------------- reference


def _reference(x, y_list):
    q = x.shape[0]
    xf = x.reshape(q, -1).astype(jnp.float32)
    protos = jnp.stack(
        [cls.reshape(cls.shape[0], -1).astype(jnp.float32).mean(axis=0) for cls in y_list])
    logits = jnp.dot(xf, protos.T, precision=jax.lax.Precision.HIGHEST)
    return jax.nn.softmax(logits, axis=1)


if __name__ == "__main__":
    key = jax.random.PRNGKey(0)

    # Small deterministic shapes consistent with the module:
    #   query_num = 8, class_num = 4, ragged support counts, features 4x16x16 (D = 1024).
    query_num, class_num = 8, 4
    ch, h, w = 4, 16, 16
    support_counts = [5, 3, 5, 4]        # ragged per-class support (PyTorch list semantics)

    keys = jax.random.split(key, 1 + class_num)
    x = jax.random.normal(keys[0], (query_num, ch, h, w), dtype=jnp.float32)
    y_list = [
        jax.random.normal(keys[1 + i], (support_counts[i], ch, h, w), dtype=jnp.float32)
        for i in range(class_num)
    ]

    # tile_d=256 forces a 4-step reduction grid so the accumulator init/finalize
    # path is exercised even at this small demo size (D = 1024).
    out = multiplication_forward(x, y_list, tile_d=256)
    out = jax.block_until_ready(out)

    ref = _reference(x, y_list)
    assert out.shape == (query_num, class_num)
    assert jnp.allclose(out, ref, atol=1e-3, rtol=1e-3), "mismatch vs reference"
    assert jnp.allclose(out.sum(axis=1), 1.0, atol=1e-5), "rows must sum to ~1"

    print("KERNEL_OK")
</pallas_src>

<mosaic_0001>
module attributes {stable_mosaic.version = 11 : i64} {
  func.func @_multiplication_kernel(%arg0: i32, %arg1: i32, %arg2: memref<8x256xf32, #tpu.memory_space<vmem>>, %arg3: memref<256x4xf32, #tpu.memory_space<vmem>>, %arg4: memref<8x4xf32, #tpu.memory_space<vmem>>) attributes {dimension_semantics = [#tpu.dimension_semantics<parallel>, #tpu.dimension_semantics<arbitrary>], iteration_bounds = array<i64: 1, 4>, scalar_prefetch = 0 : i64, scratch_operands = 0 : i64, tpu.core_type = #tpu.core_type<tc>, window_params = [{transform_indices = @transform_0, window_bounds = array<i64: 8, 256>}, {transform_indices = @transform_1, window_bounds = array<i64: 256, 4>}, {transform_indices = @transform_2, window_bounds = array<i64: 8, 4>}]} {
    %c0_i32 = arith.constant 0 : i32
    %0 = arith.cmpi eq, %arg1, %c0_i32 : i32
    %1 = arith.extui %0 : i1 to i32
    %c0_i32_0 = arith.constant 0 : i32
    %2 = arith.cmpi ne, %1, %c0_i32_0 : i32
    scf.if %2 {
      %cst_9 = arith.constant 0.000000e+00 : f32
      %12 = vector.broadcast %cst_9 : f32 to vector<8x4xf32>
      %c0_10 = arith.constant 0 : index
      %c0_11 = arith.constant 0 : index
      %13 = vector.load %arg4[%c0_10, %c0_11] : memref<8x4xf32, #tpu.memory_space<vmem>>, vector<8x4xf32>
      tpu.vector_store %arg4[%c0_10, %c0_11], %12 {strides = array<i32>} : memref<8x4xf32, #tpu.memory_space<vmem>>, vector<8x4xf32>,
    } else {
    }
    %c0 = arith.constant 0 : index
    %c0_1 = arith.constant 0 : index
    %3 = vector.load %arg4[%c0, %c0_1] : memref<8x4xf32, #tpu.memory_space<vmem>>, vector<8x4xf32>
    %c0_2 = arith.constant 0 : index
    %c0_3 = arith.constant 0 : index
    %4 = vector.load %arg2[%c0_2, %c0_3] : memref<8x256xf32, #tpu.memory_space<vmem>>, vector<8x256xf32>
    %c0_4 = arith.constant 0 : index
    %c0_5 = arith.constant 0 : index
    %5 = vector.load %arg3[%c0_4, %c0_5] : memref<256x4xf32, #tpu.memory_space<vmem>>, vector<256x4xf32>
    %cst = arith.constant dense<0.000000e+00> : vector<8x4xf32>
    %6 = tpu.matmul %4, %5, %cst {dimension_numbers = #tpu.dot_dimension_numbers<[1], [0], [0], [1], [0, 0, 1, 1], [], []>} : vector<8x256xf32>, vector<256x4xf32>, vector<8x4xf32> -> vector<8x4xf32>
    %7 = arith.addf %3, %6 : vector<8x4xf32>
    %c0_6 = arith.constant 0 : index
    %c0_7 = arith.constant 0 : index
    %8 = vector.load %arg4[%c0_6, %c0_7] : memref<8x4xf32, #tpu.memory_space<vmem>>, vector<8x4xf32>
    tpu.vector_store %arg4[%c0_6, %c0_7], %7 {strides = array<i32>} : memref<8x4xf32, #tpu.memory_space<vmem>>, vector<8x4xf32>,
    %c3_i32 = arith.constant 3 : i32
    %9 = arith.cmpi eq, %arg1, %c3_i32 : i32
    %10 = arith.extui %9 : i1 to i32
    %c0_i32_8 = arith.constant 0 : i32
    %11 = arith.cmpi ne, %10, %c0_i32_8 : i32
    scf.if %11 {
      %c0_9 = arith.constant 0 : index
      %c0_10 = arith.constant 0 : index
      %12 = vector.load %arg4[%c0_9, %c0_10] : memref<8x4xf32, #tpu.memory_space<vmem>>, vector<8x4xf32>
      %cst_11 = arith.constant dense<0xFF800000> : vector<8xf32>
      %13 = vector.multi_reduction <maximumf>, %12, %cst_11 [1] : vector<8x4xf32> to vector<8xf32>
      %14 = vector.shape_cast %13 : vector<8xf32> to vector<8x1xf32>
      %15 = vector.broadcast %14 : vector<8x1xf32> to vector<8x4xf32>
      %16 = arith.subf %12, %15 : vector<8x4xf32>
      %17 = math.exp %16 : vector<8x4xf32>
      %cst_12 = arith.constant dense<0.000000e+00> : vector<8xf32>
      %18 = vector.multi_reduction <add>, %17, %cst_12 [1] : vector<8x4xf32> to vector<8xf32>
      %19 = vector.shape_cast %18 : vector<8xf32> to vector<8x1xf32>
      %20 = vector.broadcast %19 : vector<8x1xf32> to vector<8x4xf32>
      %21 = arith.divf %17, %20 : vector<8x4xf32>
      %c0_13 = arith.constant 0 : index
      %c0_14 = arith.constant 0 : index
      %22 = vector.load %arg4[%c0_13, %c0_14] : memref<8x4xf32, #tpu.memory_space<vmem>>, vector<8x4xf32>
      tpu.vector_store %arg4[%c0_13, %c0_14], %21 {strides = array<i32>} : memref<8x4xf32, #tpu.memory_space<vmem>>, vector<8x4xf32>,
    } else {
    }
    return
  }
  func.func @transform_0(%arg0: i32, %arg1: i32) -> (i32, i32) {
    %c0_i32 = arith.constant 0 : i32
    return %arg0, %arg1 : i32, i32
  }
  func.func @transform_1(%arg0: i32, %arg1: i32) -> (i32, i32) {
    %c0_i32 = arith.constant 0 : i32
    %c0_i32_0 = arith.constant 0 : i32
    return %arg1, %c0_i32 : i32, i32
  }
  func.func @transform_2(%arg0: i32, %arg1: i32) -> (i32, i32) {
    %c0_i32 = arith.constant 0 : i32
    %c0_i32_0 = arith.constant 0 : i32
    return %arg0, %c0_i32 : i32, i32
  }
}

</mosaic_0001>

<llo_original>
// kernel: tpu_custom_call.1
$region0: #{tpu_custom_call.1}
  #allocation0 [shape = 'u32[]', space=smem, size = 0x4, offset = 0x4, fixed_abs, tag = 'smem constant byte address 0x4 - core index']
  #allocation1 [shape = 'u32[72,128]{1,0:T(1,128)}', space=vmem, size = 0x9000, scoped, tag = 'internal scratch']
  %s0 = inlined_call_operand.vmem [shape: f32[8,1024], index: 0, kind: input, shape index: {}]
  %s1 = inlined_call_operand.vmem [shape: f32[1024,4], index: 1, kind: input, shape index: {}]
  %s2 = inlined_call_operand.vmem [shape: f32[8,4], index: 2, kind: output, shape index: {}]
  %s3 = sld [smem:[#allocation0]]
  $region49: #{tpu_custom_call.1} parent=0
    _
  %s5 = ssub.s32 1, %s3
  %s6 = scalar_select 0, %s5, %s3
  loop: start=0, step=1, limit=6
  $region2: #{tpu_custom_call.1} parent=0 // loop_pre_header
    _
  $region3: #{tpu_custom_call.1} parent=0 // loop_header
    %s8 = sphi 0, %s12
    %p9 = scmp.ge.s32.totalorder %s8, 6
    %s15 = sphi 0, %s27
    %s16 = sphi 0, %s23
    %s17 = sphi 0, %s15
    %s18 = sphi 0, %s16
    %s19 = sphi 0, %s17
    %s20 = sphi 0, %s18
    %s32 = sphi 0, %s34
    %s35 = sphi 0, %s32
    %s36 = sphi 0, %s35
    %s52 = sphi 0, %s36
    %s58 = sphi 0, %s60
    %s61 = sphi 0, %s58
    %s62 = sphi 0, %s61
    %s78 = sphi 0, %s62
    %s84 = sphi 0, %s86
    %s87 = sphi 0, %s84
    %s88 = sphi 0, %s87
    %s104 = sphi 0, %s88
  $region4: #{tpu_custom_call.1} parent=0 // loop_header_branch
    %11 = sbr.rel (%p9) target = $region8
  $region5: #{tpu_custom_call.1} parent=0 // loop_body
    %s13 = ssub.s32 %s8, 1
    %s14 = ssub.s32 %s8, 2
    %s21 = sadd.s32 1, %s16
    %p22 = scmp.ge.s32.totalorder %s21, 4
    %s23 = scalar_select %p22, 0, %s21
    %s24 = sadd.s32 1, %s15
    %s25 = scalar_select %p22, %s24, %s15
    %p26 = scmp.ge.s32.totalorder %s25, 1
    %s27 = scalar_select %p26, 0, %s25
    %s28 = ssub.s32 %s15, %s27
    %s29 = ssub.s32 %s16, %s23
    %s30 = sor.u32 %s28, %s29
    %p31 = scmp.eq.s32.totalorder %s30, 0
    %s33 = sadd.s32 %s32, 1
    %s34 = scalar_select %p31, %s32, %s33
    %p37 = pneg %p31
    %p38 = scmp.eq.s32.totalorder %s8, 3
    %p39 = por %p37, %p38
    %p40 = scmp.ne.s32.totalorder %s32, %s35
    %p41 = scmp.eq.s32.totalorder %s8, 0
    %p42 = por %p40, %p41
    %p43 = scmp.ne.s32.totalorder %s32, %s35
    %p44 = scmp.eq.s32.totalorder %s13, 3
    %p45 = por %p43, %p44
    %p46 = scmp.ne.s32.totalorder %s35, %s36
    %p47 = scmp.eq.s32.totalorder %s13, 0
    %p48 = por %p46, %p47
    %p49 = scmp.ne.s32.totalorder %s35, %s36
    %p50 = scmp.eq.s32.totalorder %s14, 3
    %p51 = por %p49, %p50
    %p53 = scmp.ne.s32.totalorder %s36, %s52
    %p54 = scmp.eq.s32.totalorder %s14, 0
    %p55 = por %p53, %p54
    %s56 = ssub.s32 %s16, %s23
    %p57 = scmp.eq.s32.totalorder %s56, 0
    %s59 = sadd.s32 %s58, 1
    %s60 = scalar_select %p57, %s58, %s59
    %p63 = pneg %p57
    %p64 = scmp.eq.s32.totalorder %s8, 3
    %p65 = por %p63, %p64
    %p66 = scmp.ne.s32.totalorder %s58, %s61
    %p67 = scmp.eq.s32.totalorder %s8, 0
    %p68 = por %p66, %p67
    %p69 = scmp.ne.s32.totalorder %s58, %s61
    %p70 = scmp.eq.s32.totalorder %s13, 3
    %p71 = por %p69, %p70
    %p72 = scmp.ne.s32.totalorder %s61, %s62
    %p73 = scmp.eq.s32.totalorder %s13, 0
    %p74 = por %p72, %p73
    %p75 = scmp.ne.s32.totalorder %s61, %s62
    %p76 = scmp.eq.s32.totalorder %s14, 3
    %p77 = por %p75, %p76
    %p79 = scmp.ne.s32.totalorder %s62, %s78
    %p80 = scmp.eq.s32.totalorder %s14, 0
    %p81 = por %p79, %p80
    %s82 = ssub.s32 %s15, %s27
    %p83 = scmp.eq.s32.totalorder %s82, 0
    %s85 = sadd.s32 %s84, 1
    %s86 = scalar_select %p83, %s84, %s85
    %p89 = pneg %p83
    %p90 = scmp.eq.s32.totalorder %s8, 3
    %p91 = por %p89, %p90
    %p92 = scmp.ne.s32.totalorder %s84, %s87
    %p93 = scmp.eq.s32.totalorder %s8, 0
    %p94 = por %p92, %p93
    %p95 = scmp.ne.s32.totalorder %s84, %s87
    %p96 = scmp.eq.s32.totalorder %s13, 3
    %p97 = por %p95, %p96
    %p98 = scmp.ne.s32.totalorder %s87, %s88
    %p99 = scmp.eq.s32.totalorder %s13, 0
    %p100 = por %p98, %p99
    %p101 = scmp.ne.s32.totalorder %s87, %s88
    %p102 = scmp.eq.s32.totalorder %s14, 3
    %p103 = por %p101, %p102
    %p105 = scmp.ne.s32.totalorder %s88, %s104
    %p106 = scmp.eq.s32.totalorder %s14, 0
    %p107 = por %p105, %p106
    %p108 = scmp.le.s32.totalorder 1, %s8
    %p109 = scmp.lt.s32.totalorder %s8, 5
    %p110 = pnand %p108, %p109
    %p111 = pneg %p110
    // Predicated region
    $region9: #{tpu_custom_call.1} parent=5 // pred_check
      _
    $region10: #{tpu_custom_call.1} parent=5 // pred_check_branch
      %113 = sbr.rel (%p110) target = $region12
    $region11: #{tpu_custom_call.1} parent=5 // pred_region
      %s114 = ssub.s32 %s8, 1
    $region12: #{tpu_custom_call.1} parent=5 // pred_fallthru
      _
    %p115 = scmp.lt.s32.totalorder %s8, 4
    // Predicated region
    $region13: #{tpu_custom_call.1} parent=5 // pred_check
      %p116 = pneg %p115
    $region14: #{tpu_custom_call.1} parent=5 // pred_check_branch
      %118 = sbr.rel (%p116) target = $region16
    $region15: #{tpu_custom_call.1} parent=5 // pred_region
      // Predicated region
      $region17: #{tpu_custom_call.1} parent=15 // pred_check
        %p119 = pneg %p42
      $region18: #{tpu_custom_call.1} parent=15 // pred_check_branch
        %121 = sbr.rel (%p119) target = $region20
      $region19: #{tpu_custom_call.1} parent=15 // pred_region
        %s122 = smul.u32 2, %s16
        %p123 = scmp.lt.s32.totalorder %s15, 0
        %s124 = scalar_select %p123, %s15, 0
        %p125 = scmp.lt.s32.totalorder %s122, 7
        %s126 = scalar_select %p125, %s122, 7
        %s127 = smul.addr %s124, 8
        %s128 = sadd.s32 %s126, %s127
        %s129 = smul.addr %s128, 8
        %s130 = scalar_lea.vmem %s0, %s129
        %s131 = smul.u32 2, %s16
      $region20: #{tpu_custom_call.1} parent=15 // pred_fallthru
        _
      // Predicated region
      $region21: #{tpu_custom_call.1} parent=15 // pred_check
        %p132 = pneg %p68
      $region22: #{tpu_custom_call.1} parent=15 // pred_check_branch
        %134 = sbr.rel (%p132) target = $region24
      $region23: #{tpu_custom_call.1} parent=15 // pred_region
        %s135 = smul.u32 32, %s16
        %p136 = scmp.lt.s32.totalorder %s135, 127
        %s137 = scalar_select %p136, %s135, 127
        %s138 = smul.addr %s137, 8
        %s139 = scalar_lea.vmem %s1, %s138
        %s140 = smul.u32 32, %s16
      $region24: #{tpu_custom_call.1} parent=15 // pred_fallthru
        _
    $region16: #{tpu_custom_call.1} parent=5 // pred_fallthru
      _
    %p141 = scmp.le.s32.totalorder 1, %s8
    %p142 = scmp.lt.s32.totalorder %s8, 5
    %p143 = pnand %p141, %p142
    %p144 = pneg %p143
    // Predicated region
    $region25: #{tpu_custom_call.1} parent=5 // pred_check
      _
    $region26: #{tpu_custom_call.1} parent=5 // pred_check_branch
      %146 = sbr.rel (%p143) target = $region28
    $region27: #{tpu_custom_call.1} parent=5 // pred_region
      %s147 = ssub.s32 %s8, 1
      %s148 = smul.u32 2, %s18
      %p149 = scmp.lt.s32.totalorder %s17, 0
      %s150 = scalar_select %p149, %s17, 0
      %p151 = scmp.lt.s32.totalorder %s148, 7
      %s152 = scalar_select %p151, %s148, 7
      %s153 = smul.addr %s150, 8
      %s154 = sadd.s32 %s152, %s153
      %s155 = smul.addr %s154, 8
      %s156 = scalar_lea.vmem %s0, %s155
      %p157 = pneg %p48
      %p158 = pneg %p45
      %s159 = smul.u32 32, %s18
      %p160 = scmp.lt.s32.totalorder %s159, 127
      %s161 = scalar_select %p160, %s159, 127
      %s162 = smul.addr %s161, 8
      %s163 = scalar_lea.vmem %s1, %s162
      %p164 = pneg %p74
      %p165 = pneg %p71
      %p166 = pneg %p100
      %p167 = pneg %p97
      %p168 = scmp.lt.s32.totalorder %s17, 0
      %s169 = scalar_select %p168, %s17, 0
      %s170 = smul.addr %s169, 8
      %s171 = scalar_lea.vmem %s2, %s170
      %s172 = smul.u32 2, %s18
      %p173 = scmp.lt.s32.totalorder %s17, 0
      %s174 = scalar_select %p173, %s17, 0
      %p175 = scmp.lt.s32.totalorder %s172, 7
      %s176 = scalar_select %p175, %s172, 7
      %s177 = smul.addr %s174, 8
      %s178 = sadd.s32 %s176, %s177
      %s179 = smul.addr %s178, 8
      %s180 = scalar_lea.vmem %s0, %s179
      %s181 = smul.u32 2, %s18
      %s182 = smul.u32 32, %s18
      %p183 = scmp.lt.s32.totalorder %s182, 127
      %s184 = scalar_select %p183, %s182, 127
      %s185 = smul.addr %s184, 8
      %s186 = scalar_lea.vmem %s1, %s185
      %s187 = smul.u32 32, %s18
      %p188 = scmp.lt.s32.totalorder %s17, 0
      %s189 = scalar_select %p188, %s17, 0
      %s190 = smul.addr %s189, 8
      %s191 = scalar_lea.vmem %s2, %s190
      %p192 = scmp.eq.s32.totalorder %s18, 0
      // Predicated region
      $region29: #{tpu_custom_call.1} parent=27 // pred_check
        %p193 = pneg %p192
      $region30: #{tpu_custom_call.1} parent=27 // pred_check_branch
        %195 = sbr.rel (%p193) target = $region32
      $region31: #{tpu_custom_call.1} parent=27 // pred_region
        %vm196 = vcmask 31744
        %197 = vst.msk [vmem:[%s191] sm:$0xff] %vm196, 0.0
      $region32: #{tpu_custom_call.1} parent=27 // pred_fallthru
        _
      %v198 = vld [vmem:[%s191] sm:$0xff]
      %v199 = vld [vmem:[%s180] sm:$0xff]
      %v200 = vld [vmem:[%s180 + $0x8] sm:$0xff]
      %v201 = vld [vmem:[%s186] sm:$0xff]
      %v202 = vld [vmem:[%s186 + $0x8] sm:$0xff]
      %v203 = vld [vmem:[%s186 + $0x10] sm:$0xff]
      %v204 = vld [vmem:[%s186 + $0x18] sm:$0xff]
      %v205 = vld [vmem:[%s186 + $0x20] sm:$0xff]
      %v206 = vld [vmem:[%s186 + $0x28] sm:$0xff]
      %v207 = vld [vmem:[%s186 + $0x30] sm:$0xff]
      %v208 = vld [vmem:[%s186 + $0x38] sm:$0xff]
      %v209 = vld [vmem:[%s186 + $0x40] sm:$0xff]
      %v210 = vld [vmem:[%s186 + $0x48] sm:$0xff]
      %v211 = vld [vmem:[%s186 + $0x50] sm:$0xff]
      %v212 = vld [vmem:[%s186 + $0x58] sm:$0xff]
      %v213 = vld [vmem:[%s186 + $0x60] sm:$0xff]
      %v214 = vld [vmem:[%s186 + $0x68] sm:$0xff]
      %v215 = vld [vmem:[%s186 + $0x70] sm:$0xff]
      %v216 = vld [vmem:[%s186 + $0x78] sm:$0xff]
      %v217 = vld [vmem:[%s186 + $0x80] sm:$0xff]
      %v218 = vld [vmem:[%s186 + $0x88] sm:$0xff]
      %v219 = vld [vmem:[%s186 + $0x90] sm:$0xff]
      %v220 = vld [vmem:[%s186 + $0x98] sm:$0xff]
      %v221 = vld [vmem:[%s186 + $0xa0] sm:$0xff]
      %v222 = vld [vmem:[%s186 + $0xa8] sm:$0xff]
      %v223 = vld [vmem:[%s186 + $0xb0] sm:$0xff]
      %v224 = vld [vmem:[%s186 + $0xb8] sm:$0xff]
      %v225 = vld [vmem:[%s186 + $0xc0] sm:$0xff]
      %v226 = vld [vmem:[%s186 + $0xc8] sm:$0xff]
      %v227 = vld [vmem:[%s186 + $0xd0] sm:$0xff]
      %v228 = vld [vmem:[%s186 + $0xd8] sm:$0xff]
      %v229 = vld [vmem:[%s186 + $0xe0] sm:$0xff]
      %v230 = vld [vmem:[%s186 + $0xe8] sm:$0xff]
      %v231 = vld [vmem:[%s186 + $0xf0] sm:$0xff]
      %v232 = vld [vmem:[%s186 + $0xf8] sm:$0xff]
      %233 = vmatpush.msra.mxu0 %v216
      %234 = vmatpush.msra.mxu0 %v215
      %235 = vmatpush.msra.mxu0 %v214
      %236 = vmatpush.msra.mxu0 %v213
      %237 = vmatpush.msra.mxu0 %v212
      %238 = vmatpush.msra.mxu0 %v211
      %239 = vmatpush.msra.mxu0 %v210
      %240 = vmatpush.msra.mxu0 %v209
      %241 = vmatpush.msra.mxu0 %v208
      %242 = vmatpush.msra.mxu0 %v207
      %243 = vmatpush.msra.mxu0 %v206
      %244 = vmatpush.msra.mxu0 %v205
      %245 = vmatpush.msra.mxu0 %v204
      %246 = vmatpush.msra.mxu0 %v203
      %247 = vmatpush.msra.mxu0 %v202
      %248 = vmatpush.msra.mxu0 %v201
      %249 = vmatmul.f32.gmra.mxu0 %v199
      %v250 = vpop.f32.mrf.mxu0
      %v251 = vadd.f32 0.0, %v250
      %252 = vdwg.mxu0
      %253 = vmatpush.msra.mxu0 %v232
      %254 = vmatpush.msra.mxu0 %v231
      %255 = vmatpush.msra.mxu0 %v230
      %256 = vmatpush.msra.mxu0 %v229
      %257 = vmatpush.msra.mxu0 %v228
      %258 = vmatpush.msra.mxu0 %v227
      %259 = vmatpush.msra.mxu0 %v226
      %260 = vmatpush.msra.mxu0 %v225
      %261 = vmatpush.msra.mxu0 %v224
      %262 = vmatpush.msra.mxu0 %v223
      %263 = vmatpush.msra.mxu0 %v222
      %264 = vmatpush.msra.mxu0 %v221
      %265 = vmatpush.msra.mxu0 %v220
      %266 = vmatpush.msra.mxu0 %v219
      %267 = vmatpush.msra.mxu0 %v218
      %268 = vmatpush.msra.mxu0 %v217
      %269 = vmatmul.f32.gmra.mxu0 %v200
      %v270 = vpop.f32.mrf.mxu0
      %v271 = vadd.f32 %v251, %v270
      %272 = vdwg.mxu0
      %v273 = vadd.f32 %v198, %v271
      %vm274 = vcmask 31744
      %275 = vst.msk [vmem:[%s191] sm:$0xff] %vm274, %v273
      %p276 = scmp.eq.s32.totalorder %s18, 3
      // Predicated region
      $region33: #{tpu_custom_call.1} parent=27 // pred_check
        %p277 = pneg %p276
      $region34: #{tpu_custom_call.1} parent=27 // pred_check_branch
        %279 = sbr.rel (%p277) target = $region36
      $region35: #{tpu_custom_call.1} parent=27 // pred_region
        %v280 = vld [vmem:[%s191] sm:$0xff]
        %v281 = vsel %vm274, %v280, -inf
        %282 = vmax.xlane.f32.xlu0 %v281
        %v283 = vpop.xlane.xlu0 %282
        %v284 = vsub.f32 %v280, %v283
        %v285 = vmul.f32 %v284, 1.442695
        %v286 = vpow.pop %v285
        %v287 = vsel %vm274, %v286, 0.0
        %288 = vadd.xlane.f32.xlu0 %v287
        %v289 = vpop.xlane.xlu0 %288
        %v290 = vrcp.pop %v289
        %v291 = vmul.f32 %v289, %v290
        %v292 = vsub.f32 1.0, %v291
        %v293 = vmul.f32 %v290, %v292
        %v294 = vadd.f32 %v290, %v293
        %vm295 = vweird.f32 %v289
        %vm296 = vweird.f32 %v290
        %vm297 = vmor %vm295, %vm296
        %v298 = vsel %vm297, %v290, %v294
        %v299 = vand.u32 2147483647, %v289
        %vm300 = vcmp.eq.f32.partialorder %v299, 8.507059e+37
        %v301 = vand.u32 %v289, 2147483648
        %v302 = vor.u32 1.1754944e-38, %v301
        %v303 = vsel %vm300, %v302, %v298
        %v304 = vmul.f32 %v286, %v303
        %305 = vst.msk [vmem:[%s191] sm:$0xff] %vm274, %v304
      $region36: #{tpu_custom_call.1} parent=27 // pred_fallthru
        _
      %p306 = scmp.lt.s32.totalorder %s17, 0
      %s307 = scalar_select %p306, %s17, 0
      %s308 = smul.addr %s307, 8
      %s309 = scalar_lea.vmem %s2, %s308
      // Predicated region
      $region37: #{tpu_custom_call.1} parent=27 // pred_check
        %p310 = pneg %p97
      $region38: #{tpu_custom_call.1} parent=27 // pred_check_branch
        %312 = sbr.rel (%p310) target = $region40
      $region39: #{tpu_custom_call.1} parent=27 // pred_region
        _
      $region40: #{tpu_custom_call.1} parent=27 // pred_fallthru
        _
      // Predicated region
      $region41: #{tpu_custom_call.1} parent=27 // pred_check
        %p313 = pneg %p97
      $region42: #{tpu_custom_call.1} parent=27 // pred_check_branch
        %315 = sbr.rel (%p313) target = $region44
      $region43: #{tpu_custom_call.1} parent=27 // pred_region
        %p316 = scmp.lt.s32.totalorder %s17, 0
        %s317 = scalar_select %p316, %s17, 0
        %s318 = smul.addr %s317, 8
        %s319 = scalar_lea.vmem %s2, %s318
      $region44: #{tpu_custom_call.1} parent=27 // pred_fallthru
        _
    $region28: #{tpu_custom_call.1} parent=5 // pred_fallthru
      _
    %p320 = scmp.le.s32.totalorder 2, %s8
    // Predicated region
    $region45: #{tpu_custom_call.1} parent=5 // pred_check
      %p321 = pneg %p320
    $region46: #{tpu_custom_call.1} parent=5 // pred_check_branch
      %323 = sbr.rel (%p321) target = $region48
    $region47: #{tpu_custom_call.1} parent=5 // pred_region
      %s324 = ssub.s32 %s8, 2
    $region48: #{tpu_custom_call.1} parent=5 // pred_fallthru
      _
  $region6: #{tpu_custom_call.1} parent=0 // loop_footer
    %s12 = sadd.s32 1, %s8
  $region7: #{tpu_custom_call.1} parent=0 // loop_footer_branch
    %7 = sbr.rel target = $region3
  $region8: #{tpu_custom_call.1} parent=0 // loop_exit
    _

</llo_original>
